<compile_context>
chip_gen: v7x
topology: tpu7x:2x2x1
jax: 0.10.0
libtpu: 0.0.40
codegen_flags: <defaults>
</compile_context>

<pallas_src>
from functools import partial

import jax
import jax.numpy as jnp
from jax.experimental import pallas as pl
from jax.experimental.pallas import tpu as pltpu

OBS_DIM = 4      # CartPole observation_space.shape[0]
MID = 10         # mid_shape
ACT = 2          # CartPole action_space.n

LANES = 128                  # TPU lane width
MID_PAD = 16                 # hidden width padded to 16 lanes / 16 w2 rows
W2_ROW = 0                   # rows [0, 16)  : w2 padded, valid at [0:MID, 0:ACT]
W1_ROW = MID_PAD             # rows [16, 20) : w1, valid at [:, 0:MID]
B1_ROW = W1_ROW + OBS_DIM    # row 20        : b1, valid at [0:MID]
B2_ROW = B1_ROW + 1          # row 21        : b2, valid at [0:ACT]
PARAM_ROWS = 24              # 22 used rows padded to a sublane multiple (8)

GRIDLESS_MAX_B = 8192        # whole-array path up to here (~8.5 MB VMEM worst case)
DEFAULT_BLOCK_B = 2048       # batch tile per grid step for very large batches


def mlp_kernel(x_ref, p_ref, o_ref):
    # x_ref: (bB, OBS_DIM) f32; p_ref: (PARAM_ROWS, LANES) f32; o_ref: (bB, ACT) f32
    x = x_ref[...]                                     # (bB, 4)
    w1 = p_ref[W1_ROW:W1_ROW + OBS_DIM, :MID_PAD]      # (4, 16),  cols >= MID are 0
    b1 = p_ref[B1_ROW:B1_ROW + 1, :MID_PAD]            # (1, 16),  lanes >= MID are 0
    w2 = p_ref[W2_ROW:W2_ROW + MID_PAD, :]             # (16, 128), rows>=MID / cols>=ACT are 0
    b2 = p_ref[B2_ROW:B2_ROW + 1, :]                   # (1, 128), lanes >= ACT are 0

    # Layer 1: (bB,4) @ (4,16) + b1, ReLU. Padded lanes [MID:16) stay exactly 0.
    h = jnp.maximum(jnp.dot(x, w1, preferred_element_type=jnp.float32) + b1, 0.0)
    # Layer 2: (bB,16) @ (16,128) + b2 -> lane-dense MXU result; store only the
    # ACT valid lanes (tiny masked vst, no separate wrapper slice HLO).
    y = jnp.dot(h, w2, preferred_element_type=jnp.float32) + b2
    o_ref[...] = y[:, :ACT]


def pack_params(w1, b1, w2, b2):
    """Pack all parameters (done once, outside the hot loop) into one 12 KB slab."""
    slab = jnp.zeros((PARAM_ROWS, LANES), jnp.float32)
    slab = slab.at[W2_ROW:W2_ROW + MID, :ACT].set(w2.astype(jnp.float32))
    slab = slab.at[W1_ROW:W1_ROW + OBS_DIM, :MID].set(w1.astype(jnp.float32))
    slab = slab.at[B1_ROW, :MID].set(b1.reshape(-1).astype(jnp.float32))
    slab = slab.at[B2_ROW, :ACT].set(b2.reshape(-1).astype(jnp.float32))
    return slab


@partial(jax.jit, static_argnames=("block_b",))
def net_forward(x, param_slab, block_b=DEFAULT_BLOCK_B):
    """Forward pass returning (B, ACT) Q-values.

    B <= GRIDLESS_MAX_B : single gridless kernel (no pipeline machinery).
    B  > GRIDLESS_MAX_B : batch-tiled grid (block_b rows / step, 'parallel'
                          axis so v7x's two TensorCores split the batch); B is
                          padded up to a multiple of block_b so the grid is
                          exact and the gridless fallback can never see a huge
                          ragged batch.
    """
    B = x.shape[0]
    vmem = pltpu.MemorySpace.VMEM

    if B <= GRIDLESS_MAX_B:
        return pl.pallas_call(
            mlp_kernel,
            out_shape=jax.ShapeDtypeStruct((B, ACT), jnp.float32),
            in_specs=[pl.BlockSpec(memory_space=vmem),
                      pl.BlockSpec(memory_space=vmem)],
            out_specs=pl.BlockSpec(memory_space=vmem),
        )(x, param_slab)

    # Very large batch: exact grid via wrapper-side padding (no-op when B divides).
    n_blocks = pl.cdiv(B, block_b)
    B_pad = n_blocks * block_b
    x_in = x if B_pad == B else jnp.pad(x, ((0, B_pad - B), (0, 0)))
    out = pl.pallas_call(
        mlp_kernel,
        out_shape=jax.ShapeDtypeStruct((B_pad, ACT), jnp.float32),
        grid=(n_blocks,),
        in_specs=[pl.BlockSpec((block_b, OBS_DIM), lambda i: (i, 0)),
                  pl.BlockSpec((PARAM_ROWS, LANES), lambda i: (0, 0))],
        out_specs=pl.BlockSpec((block_b, ACT), lambda i: (i, 0)),
        compiler_params=pltpu.CompilerParams(
            dimension_semantics=("parallel",)),
    )(x_in, param_slab)
    return out if B_pad == B else out[:B]


def init_params(key):
    # PyTorch nn.Linear default init: U(-1/sqrt(fan_in), +1/sqrt(fan_in))
    k1, k2, k3, k4 = jax.random.split(key, 4)
    bound1 = 1.0 / jnp.sqrt(float(OBS_DIM))
    bound2 = 1.0 / jnp.sqrt(float(MID))
    w1 = jax.random.uniform(k1, (OBS_DIM, MID), jnp.float32, -bound1, bound1)
    b1 = jax.random.uniform(k2, (MID,), jnp.float32, -bound1, bound1)
    w2 = jax.random.uniform(k3, (MID, ACT), jnp.float32, -bound2, bound2)
    b2 = jax.random.uniform(k4, (ACT,), jnp.float32, -bound2, bound2)
    return w1, b1, w2, b2


if __name__ == "__main__":
    key = jax.random.PRNGKey(0)
    kx, kx2, kp = jax.random.split(key, 3)
    w1, b1, w2, b2 = init_params(kp)
    slab = pack_params(w1, b1, w2, b2)   # packed once; reused for every forward call

    def reference(x):
        return jnp.maximum(x @ w1 + b1, 0.0) @ w2 + b2

    # Small-batch (act-selection / typical replay batch) path: gridless kernel.
    B = 8
    x = jax.random.normal(kx, (B, OBS_DIM), jnp.float32)
    out = jax.block_until_ready(net_forward(x, slab))
    assert out.shape == (B, ACT)
    assert jnp.allclose(out, reference(x), atol=1e-5, rtol=1e-5)

    # Very-large-batch path: batch-tiled grid (block_b=2048 per step), params resident.
    B_big = 16384
    x_big = jax.random.normal(kx2, (B_big, OBS_DIM), jnp.float32)
    out_big = jax.block_until_ready(net_forward(x_big, slab))
    assert out_big.shape == (B_big, ACT)
    assert jnp.allclose(out_big, reference(x_big), atol=1e-5, rtol=1e-5)

    print("KERNEL_OK")
</pallas_src>

<mosaic_0001>
module attributes {stable_mosaic.version = 11 : i64} {
  func.func @mlp_kernel(%arg0: memref<8x4xf32, #tpu.memory_space<vmem>>, %arg1: memref<24x128xf32, #tpu.memory_space<vmem>>, %arg2: memref<8x2xf32, #tpu.memory_space<vmem>>) attributes {dimension_semantics = [], scalar_prefetch = 0 : i64, scratch_operands = 0 : i64, tpu.core_type = #tpu.core_type<tc>} {
    %c0 = arith.constant 0 : index
    %c0_0 = arith.constant 0 : index
    %0 = vector.load %arg0[%c0, %c0_0] : memref<8x4xf32, #tpu.memory_space<vmem>>, vector<8x4xf32>
    %c16 = arith.constant 16 : index
    %c0_1 = arith.constant 0 : index
    %1 = vector.load %arg1[%c16, %c0_1] : memref<24x128xf32, #tpu.memory_space<vmem>>, vector<4x16xf32>
    %c20 = arith.constant 20 : index
    %c0_2 = arith.constant 0 : index
    %2 = vector.load %arg1[%c20, %c0_2] : memref<24x128xf32, #tpu.memory_space<vmem>>, vector<1x16xf32>
    %c0_3 = arith.constant 0 : index
    %c0_4 = arith.constant 0 : index
    %3 = vector.load %arg1[%c0_3, %c0_4] : memref<24x128xf32, #tpu.memory_space<vmem>>, vector<16x128xf32>
    %c21 = arith.constant 21 : index
    %c0_5 = arith.constant 0 : index
    %4 = vector.load %arg1[%c21, %c0_5] : memref<24x128xf32, #tpu.memory_space<vmem>>, vector<1x128xf32>
    %cst = arith.constant dense<0.000000e+00> : vector<8x16xf32>
    %5 = tpu.matmul %0, %1, %cst {dimension_numbers = #tpu.dot_dimension_numbers<[1], [0], [0], [1], [0, 0, 1, 1], [], []>} : vector<8x4xf32>, vector<4x16xf32>, vector<8x16xf32> -> vector<8x16xf32>
    %6 = vector.broadcast %2 : vector<1x16xf32> to vector<8x16xf32>
    %7 = arith.addf %5, %6 : vector<8x16xf32>
    %cst_6 = arith.constant 0.000000e+00 : f32
    %8 = vector.broadcast %cst_6 : f32 to vector<8x16xf32>
    %9 = arith.maximumf %7, %8 : vector<8x16xf32>
    %cst_7 = arith.constant dense<0.000000e+00> : vector<8x128xf32>
    %10 = tpu.matmul %9, %3, %cst_7 {dimension_numbers = #tpu.dot_dimension_numbers<[1], [0], [0], [1], [0, 0, 1, 1], [], []>} : vector<8x16xf32>, vector<16x128xf32>, vector<8x128xf32> -> vector<8x128xf32>
    %11 = vector.broadcast %4 : vector<1x128xf32> to vector<8x128xf32>
    %12 = arith.addf %10, %11 : vector<8x128xf32>
    %13 = vector.extract_strided_slice %12 {offsets = [0, 0], sizes = [8, 2], strides = [1, 1]} : vector<8x128xf32> to vector<8x2xf32>
    %c0_8 = arith.constant 0 : index
    %c0_9 = arith.constant 0 : index
    %14 = vector.load %arg2[%c0_8, %c0_9] : memref<8x2xf32, #tpu.memory_space<vmem>>, vector<8x2xf32>
    tpu.vector_store %arg2[%c0_8, %c0_9], %13 {strides = array<i32>} : memref<8x2xf32, #tpu.memory_space<vmem>>, vector<8x2xf32>,
    return
  }
}

</mosaic_0001>

<llo_original>
// kernel: net_forward.1
$region0: #{net_forward.1}
  #allocation0 [shape = 'u32[]', space=smem, size = 0x4, offset = 0x4, fixed_abs, tag = 'smem constant byte address 0x4 - core index']
  #allocation1 [shape = 'u32[144,128]{1,0:T(1,128)}', space=vmem, size = 0x12000, scoped, tag = 'internal scratch']
  %s0 = inlined_call_operand.vmem [shape: f32[8,4], index: 0, kind: input, shape index: {}]
  %s1 = inlined_call_operand.hbm [shape: f32[24,128], index: 1, kind: input, shape index: {}]
  %s2 = inlined_call_operand.vmem [shape: f32[8,2], index: 2, kind: output, shape index: {}]
  %s3 = sld [smem:[#allocation0]]
  $region22: #{net_forward.1} parent=0
    _
  %s5 = ssub.s32 1, %s3
  %s6 = scalar_select 0, %s5, %s3
  $region1: #{net_forward.1} parent=0
    #allocation2 [shape = 'u8[12288]{0}', space=vmem, size = 0x3000, scoped, tag = 'input window, operand 1, single buffered']
    #allocation3 [shape = 's32[1]{0}', space=sflag, size = 0x4, scoped, tag = 'scoped memory for net_forward.1']
    %7 = vsyncpa [#allocation3], 0
    // Predicated region
    $region2: #{net_forward.1} parent=1 // pred_check
      _
    $region3: #{net_forward.1} parent=1 // pred_check_branch
      %9 = sbr.rel (0) target = $region5
    $region4: #{net_forward.1} parent=1 // pred_region
      _
    $region5: #{net_forward.1} parent=1 // pred_fallthru
      _
    // Predicated region
    $region6: #{net_forward.1} parent=1 // pred_check
      _
    $region7: #{net_forward.1} parent=1 // pred_check_branch
      %11 = sbr.rel (0) target = $region9
    $region8: #{net_forward.1} parent=1 // pred_region
      %s13 = ssub.s32 384, 384
      %14 = vsyncadd [#allocation3], %s13
      %s15 = sshll.u32 [#allocation2], 4
      %s16 = int_to_ptr.vmem [resolvable:$true] %s15
      %21 = dma.hbm_to_vmem [thread:$0]  %s1, 384, %s16, [#allocation3], 128, 128, 8
    $region9: #{net_forward.1} parent=1 // pred_fallthru
      _
    // Predicated region
    $region10: #{net_forward.1} parent=1 // pred_check
      _
    $region11: #{net_forward.1} parent=1 // pred_check_branch
      %23 = sbr.rel (0) target = $region13
    $region12: #{net_forward.1} parent=1 // pred_region
      %24 = dma.done [#allocation3], 384
    $region13: #{net_forward.1} parent=1 // pred_fallthru
      _
    %v25 = vld [vmem:[%s0] sm:$0xff]
    %v26 = vld [vmem:[#allocation2 + $0x10] sm:$0xf]
    %v27 = vld [vmem:[#allocation2 + $0x14] sm:$0x1]
    %v28 = vld [vmem:[#allocation2] sm:$0xff]
    %v29 = vld [vmem:[#allocation2 + $0x8] sm:$0xff]
    %v30 = vld [vmem:[#allocation2 + $0x15] sm:$0x1]
    %v31 = vlaneseq
    %v32 = vshrl.u32 %v31, 7
    %v33 = vsub.s32 0, %v32
    %v34 = vrot.slane %v27, %v33
    %vm35 = vcmask 31744
    %v37 = vsel %vm35, %v25, 0
    %vm39 = vcmask 1043456
    %v41 = vsel %vm39, %v26, 0
    %43 = vmatprep.subr.mxu0 0.0
    %44 = vmatpush1.msra.mxu0 %v41
    %45 = vmatprep.subr.mxu0 0.0
    %46 = vmatpush1.msra.mxu0 0.0
    %47 = vmatprep.subr.mxu0 0.0
    %48 = vmatpush1.msra.mxu0 0.0
    %49 = vmatprep.subr.mxu0 0.0
    %50 = vmatpush1.msra.mxu0 0.0
    %51 = vmatprep.subr.mxu0 0.0
    %52 = vmatpush1.msra.mxu0 0.0
    %53 = vmatprep.subr.mxu0 0.0
    %54 = vmatpush1.msra.mxu0 0.0
    %55 = vmatprep.subr.mxu0 0.0
    %56 = vmatpush1.msra.mxu0 0.0
    %57 = vmatprep.subr.mxu0 0.0
    %58 = vmatpush1.msra.mxu0 0.0
    %59 = vmatprep.subr.mxu0 0.0
    %60 = vmatpush1.msra.mxu0 0.0
    %61 = vmatprep.subr.mxu0 0.0
    %62 = vmatpush1.msra.mxu0 0.0
    %63 = vmatprep.subr.mxu0 0.0
    %64 = vmatpush1.msra.mxu0 0.0
    %65 = vmatprep.subr.mxu0 0.0
    %66 = vmatpush1.msra.mxu0 0.0
    %67 = vmatprep.subr.mxu0 0.0
    %68 = vmatpush1.msra.mxu0 0.0
    %69 = vmatprep.subr.mxu0 0.0
    %70 = vmatpush1.msra.mxu0 0.0
    %71 = vmatprep.subr.mxu0 0.0
    %72 = vmatpush1.msra.mxu0 0.0
    %73 = vmatprep.subr.mxu0 0.0
    %74 = vmatpush1.msra.mxu0 0.0
    %75 = vmatprep.subr.mxu0 0.0
    %76 = vmatpush1.msra.mxu0 0.0
    %77 = vmatprep.subr.mxu0 0.0
    %78 = vmatpush1.msra.mxu0 0.0
    %79 = vmatprep.subr.mxu0 0.0
    %80 = vmatpush1.msra.mxu0 0.0
    %81 = vmatprep.subr.mxu0 0.0
    %82 = vmatpush1.msra.mxu0 0.0
    %83 = vmatprep.subr.mxu0 0.0
    %84 = vmatpush1.msra.mxu0 0.0
    %85 = vmatprep.subr.mxu0 0.0
    %86 = vmatpush1.msra.mxu0 0.0
    %87 = vmatprep.subr.mxu0 0.0
    %88 = vmatpush1.msra.mxu0 0.0
    %89 = vmatprep.subr.mxu0 0.0
    %90 = vmatpush1.msra.mxu0 0.0
    %91 = vmatprep.subr.mxu0 0.0
    %92 = vmatpush1.msra.mxu0 0.0
    %93 = vmatprep.subr.mxu0 0.0
    %94 = vmatpush1.msra.mxu0 0.0
    %95 = vmatprep.subr.mxu0 0.0
    %96 = vmatpush1.msra.mxu0 0.0
    %97 = vmatprep.subr.mxu0 0.0
    %98 = vmatpush1.msra.mxu0 0.0
    %99 = vmatprep.subr.mxu0 0.0
    %100 = vmatpush1.msra.mxu0 0.0
    %101 = vmatprep.subr.mxu0 0.0
    %102 = vmatpush1.msra.mxu0 0.0
    %103 = vmatprep.subr.mxu0 0.0
    %104 = vmatpush1.msra.mxu0 0.0
    %105 = vmatprep.subr.mxu0 0.0
    %106 = vmatpush1.msra.mxu0 0.0
    %107 = vmatprep.mubr.f32.mxu0 0.0
    %108 = vmatmul.mubr.f32.gmra.mrb[0].mxu0 %v37
    %v109 = vpop.f32.mrb[0].mxu0
    %v110 = vadd.f32 %v34, %v109
    %v111 = vpop.f32.mrb[0].mxu0
    %112 = vdwg.mxu0
    %v113 = vmax.f32 %v110, 0.0
    %v114 = vlaneseq
    %v115 = vshrl.u32 %v114, 7
    %v116 = vsub.s32 0, %v115
    %v117 = vrot.slane %v30, %v116
    %vm118 = vcmask 130048
    %v120 = vsel %vm118, %v113, 0
    %122 = vmatprep.subr.mxu0 0.0
    %123 = vmatpush1.msra.mxu0 %v28
    %124 = vmatprep.subr.mxu0 0.0
    %125 = vmatpush1.msra.mxu0 %v29
    %126 = vmatprep.subr.mxu0 0.0
    %127 = vmatpush1.msra.mxu0 0.0
    %128 = vmatprep.subr.mxu0 0.0
    %129 = vmatpush1.msra.mxu0 0.0
    %130 = vmatprep.subr.mxu0 0.0
    %131 = vmatpush1.msra.mxu0 0.0
    %132 = vmatprep.subr.mxu0 0.0
    %133 = vmatpush1.msra.mxu0 0.0
    %134 = vmatprep.subr.mxu0 0.0
    %135 = vmatpush1.msra.mxu0 0.0
    %136 = vmatprep.subr.mxu0 0.0
    %137 = vmatpush1.msra.mxu0 0.0
    %138 = vmatprep.subr.mxu0 0.0
    %139 = vmatpush1.msra.mxu0 0.0
    %140 = vmatprep.subr.mxu0 0.0
    %141 = vmatpush1.msra.mxu0 0.0
    %142 = vmatprep.subr.mxu0 0.0
    %143 = vmatpush1.msra.mxu0 0.0
    %144 = vmatprep.subr.mxu0 0.0
    %145 = vmatpush1.msra.mxu0 0.0
    %146 = vmatprep.subr.mxu0 0.0
    %147 = vmatpush1.msra.mxu0 0.0
    %148 = vmatprep.subr.mxu0 0.0
    %149 = vmatpush1.msra.mxu0 0.0
    %150 = vmatprep.subr.mxu0 0.0
    %151 = vmatpush1.msra.mxu0 0.0
    %152 = vmatprep.subr.mxu0 0.0
    %153 = vmatpush1.msra.mxu0 0.0
    %154 = vmatprep.subr.mxu0 0.0
    %155 = vmatpush1.msra.mxu0 0.0
    %156 = vmatprep.subr.mxu0 0.0
    %157 = vmatpush1.msra.mxu0 0.0
    %158 = vmatprep.subr.mxu0 0.0
    %159 = vmatpush1.msra.mxu0 0.0
    %160 = vmatprep.subr.mxu0 0.0
    %161 = vmatpush1.msra.mxu0 0.0
    %162 = vmatprep.subr.mxu0 0.0
    %163 = vmatpush1.msra.mxu0 0.0
    %164 = vmatprep.subr.mxu0 0.0
    %165 = vmatpush1.msra.mxu0 0.0
    %166 = vmatprep.subr.mxu0 0.0
    %167 = vmatpush1.msra.mxu0 0.0
    %168 = vmatprep.subr.mxu0 0.0
    %169 = vmatpush1.msra.mxu0 0.0
    %170 = vmatprep.subr.mxu0 0.0
    %171 = vmatpush1.msra.mxu0 0.0
    %172 = vmatprep.subr.mxu0 0.0
    %173 = vmatpush1.msra.mxu0 0.0
    %174 = vmatprep.subr.mxu0 0.0
    %175 = vmatpush1.msra.mxu0 0.0
    %176 = vmatprep.subr.mxu0 0.0
    %177 = vmatpush1.msra.mxu0 0.0
    %178 = vmatprep.subr.mxu0 0.0
    %179 = vmatpush1.msra.mxu0 0.0
    %180 = vmatprep.subr.mxu0 0.0
    %181 = vmatpush1.msra.mxu0 0.0
    %182 = vmatprep.subr.mxu0 0.0
    %183 = vmatpush1.msra.mxu0 0.0
    %184 = vmatprep.subr.mxu0 0.0
    %185 = vmatpush1.msra.mxu0 0.0
    %186 = vmatprep.mubr.f32.mxu0 0.0
    %187 = vmatmul.mubr.f32.gmra.mrb[0].mxu0 %v120
    %v188 = vpop.f32.mrb[0].mxu0
    %v189 = vadd.f32 %v117, %v188
    %v190 = vpop.f32.mrb[0].mxu0
    %191 = vdwg.mxu0
    %vm192 = vcmask 15360
    %193 = vst.msk [vmem:[%s2] sm:$0xff] %vm192, %v189
    // Predicated region
    $region14: #{net_forward.1} parent=1 // pred_check
      _
    $region15: #{net_forward.1} parent=1 // pred_check_branch
      %195 = sbr.rel (0) target = $region17
    $region16: #{net_forward.1} parent=1 // pred_region
      _
    $region17: #{net_forward.1} parent=1 // pred_fallthru
      _
    // Predicated region
    $region18: #{net_forward.1} parent=1 // pred_check
      _
    $region19: #{net_forward.1} parent=1 // pred_check_branch
      %197 = sbr.rel (0) target = $region21
    $region20: #{net_forward.1} parent=1 // pred_region
      _
    $region21: #{net_forward.1} parent=1 // pred_fallthru
      _
    %198 = vsyncpa [#allocation3], 1

</llo_original>
